<compile_context>
chip_gen: v7x
topology: tpu7x:2x2x1
jax: 0.10.0
libtpu: 0.0.40
codegen_flags: <defaults>
</compile_context>

<pallas_src>
import jax
import jax.numpy as jnp
from jax.experimental import pallas as pl
from jax.experimental.pallas import tpu as pltpu


def _round_up(x: int, m: int) -> int:
    return ((x + m - 1) // m) * m


def _pick_tile(size: int, unit: int, cap: int) -> int:
    """Largest multiple of `unit` that exactly divides `size` and is <= cap.

    `size` is assumed to already be a multiple of `unit` (post-padding), so
    tiles always divide the padded dims and no extra padding is needed.
    """
    q = size // unit
    r_max = max(1, min(q, cap // unit))
    for r in range(r_max, 0, -1):
        if q % r == 0:
            return unit * r
    return unit


def _vmem_limit_bytes() -> int:
    """~75% of physical VMEM: headroom for compiler scratch / double-buffers."""
    try:
        cap = pltpu.get_tpu_info().vmem_capacity_bytes
    except Exception:
        cap = 64 << 20  # conservative fallback (v7x physical size)
    return int(cap) * 3 // 4


def _affine_kernel_single_k(x_ref, w_ref, b_ref, o_ref):
    """Whole contraction in one pass: no accumulator, no init/finalize."""
    o_ref[...] = (
        jnp.dot(x_ref[...], w_ref[...], preferred_element_type=jnp.float32)
        + b_ref[...]
    ).astype(o_ref.dtype)


def _affine_kernel_multi_k(x_ref, w_ref, b_ref, o_ref):
    """K is a grid axis; accumulate directly into the resident f32 output."""
    @pl.when(pl.program_id(2) == 0)
    def _():
        # Fold the bias add into the accumulator init.
        o_ref[...] = jnp.broadcast_to(b_ref[...], o_ref.shape)

    o_ref[...] += jnp.dot(
        x_ref[...], w_ref[...], preferred_element_type=jnp.float32
    )


def regression_forward(x, w, b, *, tm_max=512, tk_max=2048, tn_max=512,
                       allow_xla_fast_path=True):
    """Pallas-backed forward pass: y = x @ W + b.

    x: [N, D] float32,  w: [D, O] float32,  b: [1, O] float32  ->  [N, O] f32
    """
    n, d = x.shape
    d2, o = w.shape
    assert d == d2 and b.shape == (1, o)

    # Toy problems (the homework shape): a single-step pallas_call's fixed
    # dispatch/pipeline overhead dominates a sub-microsecond GEMV; XLA fusion
    # is strictly faster there.
    if allow_xla_fast_path and n <= 8 and d <= 256 and o <= 128:
        return x @ w + b

    # --- pad only to hardware (8, 128) alignment (NOT to tile size) ---------
    n_pad = _round_up(n, 8)
    d_pad = _round_up(d, 128)
    o_pad = _round_up(o, 128)

    x_p = x if (n_pad == n and d_pad == d) else jnp.pad(
        x, ((0, n_pad - n), (0, d_pad - d)))
    w_p = w if (d_pad == d and o_pad == o) else jnp.pad(
        w, ((0, d_pad - d), (0, o_pad - o)))
    b_p = b if o_pad == o else jnp.pad(b, ((0, 0), (0, o_pad - o)))

    # --- tile sizes: exact divisors of the padded dims ----------------------
    tm = _pick_tile(n_pad, 8, tm_max)
    tk = _pick_tile(d_pad, 128, tk_max)
    tn = _pick_tile(o_pad, 128, tn_max)

    # Megacore friendliness (v7x: 2 TensorCores): if M collapsed into a single
    # big block but the row count is large, prefer a balanced >=2-way split so
    # both cores get (nearly) equal real rows instead of one core idling.
    if tm == n_pad and n_pad >= 512:
        tm_half = _pick_tile(n_pad, 8, n_pad // 2)
        if tm_half >= 128:
            tm = tm_half

    vmem_limit = _vmem_limit_bytes()

    if tk == d_pad:
        # Single contraction pass: 2-D grid, lane-dense unmasked output store.
        out_p = pl.pallas_call(
            _affine_kernel_single_k,
            out_shape=jax.ShapeDtypeStruct((n_pad, o_pad), jnp.float32),
            grid_spec=pltpu.PrefetchScalarGridSpec(
                num_scalar_prefetch=0,
                grid=(n_pad // tm, o_pad // tn),
                in_specs=[
                    pl.BlockSpec((tm, d_pad), lambda i, j: (i, 0)),   # x tile
                    pl.BlockSpec((d_pad, tn), lambda i, j: (0, j)),   # w tile
                    pl.BlockSpec((1, tn), lambda i, j: (0, j)),       # bias
                ],
                out_specs=pl.BlockSpec((tm, tn), lambda i, j: (i, j)),
            ),
            compiler_params=pltpu.CompilerParams(
                dimension_semantics=("parallel", "parallel"),
                vmem_limit_bytes=vmem_limit,
            ),
        )(x_p, w_p, b_p)
    else:
        # Very large D: K grid axis, accumulate straight into the f32 output.
        out_p = pl.pallas_call(
            _affine_kernel_multi_k,
            out_shape=jax.ShapeDtypeStruct((n_pad, o_pad), jnp.float32),
            grid_spec=pltpu.PrefetchScalarGridSpec(
                num_scalar_prefetch=0,
                grid=(n_pad // tm, o_pad // tn, d_pad // tk),
                in_specs=[
                    pl.BlockSpec((tm, tk), lambda i, j, k: (i, k)),   # x tile
                    pl.BlockSpec((tk, tn), lambda i, j, k: (k, j)),   # w tile
                    pl.BlockSpec((1, tn), lambda i, j, k: (0, j)),    # bias
                ],
                out_specs=pl.BlockSpec((tm, tn), lambda i, j, k: (i, j)),
            ),
            compiler_params=pltpu.CompilerParams(
                dimension_semantics=("parallel", "parallel", "arbitrary"),
                vmem_limit_bytes=vmem_limit,
            ),
        )(x_p, w_p, b_p)

    if n_pad == n and o_pad == o:
        return out_p
    return out_p[:n, :o]


if __name__ == "__main__":
    key = jax.random.PRNGKey(0)
    kx, kw, kb = jax.random.split(key, 3)

    # Homework-scale shapes: batch=8, in_features=32, scalar regression target.
    batch, in_features, out_features = 8, 32, 1
    x = jax.random.normal(kx, (batch, in_features), dtype=jnp.float32)
    w = jax.random.normal(kw, (in_features, out_features), dtype=jnp.float32) * 0.1
    b = jax.random.normal(kb, (1, out_features), dtype=jnp.float32) * 0.1
    y_ref = x @ w + b

    # Force the Pallas path so the kernel itself is exercised at the toy shape.
    y = jax.block_until_ready(regression_forward(x, w, b, allow_xla_fast_path=False))
    assert y.shape == (batch, out_features)
    assert jnp.allclose(y, y_ref, atol=1e-5, rtol=1e-5)

    # The XLA fast path (default at toy sizes) must agree too.
    y_fast = jax.block_until_ready(regression_forward(x, w, b))
    assert jnp.allclose(y_fast, y_ref, atol=1e-5, rtol=1e-5)

    # Mis-aligned multi-row shape: exercises (8,128)-only padding + the
    # single-K (no-accumulator) path.
    kx2, kw2, kb2 = jax.random.split(jax.random.PRNGKey(1), 3)
    x2 = jax.random.normal(kx2, (300, 700), dtype=jnp.float32)
    w2 = jax.random.normal(kw2, (700, 130), dtype=jnp.float32) * 0.05
    b2 = jax.random.normal(kb2, (1, 130), dtype=jnp.float32) * 0.05
    y2 = jax.block_until_ready(regression_forward(x2, w2, b2))
    y2_ref = jnp.dot(x2, w2, precision=jax.lax.Precision.HIGHEST) + b2
    assert jnp.allclose(y2, y2_ref, atol=2e-3, rtol=2e-3)

    # Large-D shape: exercises the multi-K accumulate-into-output path.
    kx3, kw3, kb3 = jax.random.split(jax.random.PRNGKey(2), 3)
    x3 = jax.random.normal(kx3, (64, 4096), dtype=jnp.float32)
    w3 = jax.random.normal(kw3, (4096, 128), dtype=jnp.float32) * 0.02
    b3 = jax.random.normal(kb3, (1, 128), dtype=jnp.float32) * 0.02
    y3 = jax.block_until_ready(regression_forward(x3, w3, b3))
    y3_ref = jnp.dot(x3, w3, precision=jax.lax.Precision.HIGHEST) + b3
    assert jnp.allclose(y3, y3_ref, atol=1e-2, rtol=1e-2)

    print("KERNEL_OK")
</pallas_src>

<mosaic_0001>
module attributes {stable_mosaic.version = 11 : i64} {
  func.func @_affine_kernel_single_k(%arg0: i32, %arg1: i32, %arg2: memref<8x128xf32, #tpu.memory_space<vmem>>, %arg3: memref<128x128xf32, #tpu.memory_space<vmem>>, %arg4: memref<1x128xf32, #tpu.memory_space<vmem>>, %arg5: memref<8x128xf32, #tpu.memory_space<vmem>>) attributes {dimension_semantics = [#tpu.dimension_semantics<parallel>, #tpu.dimension_semantics<parallel>], iteration_bounds = array<i64: 1, 1>, scalar_prefetch = 0 : i64, scratch_operands = 0 : i64, tpu.core_type = #tpu.core_type<tc>, window_params = [{transform_indices = @transform_0, window_bounds = array<i64: 8, 128>}, {transform_indices = @transform_1, window_bounds = array<i64: 128, 128>}, {transform_indices = @transform_2, window_bounds = array<i64: 1, 128>}, {transform_indices = @transform_3, window_bounds = array<i64: 8, 128>}]} {
    %c0 = arith.constant 0 : index
    %c0_0 = arith.constant 0 : index
    %0 = vector.load %arg2[%c0, %c0_0] : memref<8x128xf32, #tpu.memory_space<vmem>>, vector<8x128xf32>
    %c0_1 = arith.constant 0 : index
    %c0_2 = arith.constant 0 : index
    %1 = vector.load %arg3[%c0_1, %c0_2] : memref<128x128xf32, #tpu.memory_space<vmem>>, vector<128x128xf32>
    %cst = arith.constant dense<0.000000e+00> : vector<8x128xf32>
    %2 = tpu.matmul %0, %1, %cst {dimension_numbers = #tpu.dot_dimension_numbers<[1], [0], [0], [1], [0, 0, 1, 1], [], []>} : vector<8x128xf32>, vector<128x128xf32>, vector<8x128xf32> -> vector<8x128xf32>
    %c0_3 = arith.constant 0 : index
    %c0_4 = arith.constant 0 : index
    %3 = vector.load %arg4[%c0_3, %c0_4] : memref<1x128xf32, #tpu.memory_space<vmem>>, vector<1x128xf32>
    %4 = vector.broadcast %3 : vector<1x128xf32> to vector<8x128xf32>
    %5 = arith.addf %2, %4 : vector<8x128xf32>
    %c0_5 = arith.constant 0 : index
    %c0_6 = arith.constant 0 : index
    %6 = vector.load %arg5[%c0_5, %c0_6] : memref<8x128xf32, #tpu.memory_space<vmem>>, vector<8x128xf32>
    tpu.vector_store %arg5[%c0_5, %c0_6], %5 {strides = array<i32>} : memref<8x128xf32, #tpu.memory_space<vmem>>, vector<8x128xf32>,
    return
  }
  func.func @transform_0(%arg0: i32, %arg1: i32) -> (i32, i32) {
    %c0_i32 = arith.constant 0 : i32
    %c0_i32_0 = arith.constant 0 : i32
    return %arg0, %c0_i32 : i32, i32
  }
  func.func @transform_1(%arg0: i32, %arg1: i32) -> (i32, i32) {
    %c0_i32 = arith.constant 0 : i32
    %c0_i32_0 = arith.constant 0 : i32
    return %c0_i32, %arg1 : i32, i32
  }
  func.func @transform_2(%arg0: i32, %arg1: i32) -> (i32, i32) {
    %c0_i32 = arith.constant 0 : i32
    %c0_i32_0 = arith.constant 0 : i32
    return %c0_i32, %arg1 : i32, i32
  }
  func.func @transform_3(%arg0: i32, %arg1: i32) -> (i32, i32) {
    %c0_i32 = arith.constant 0 : i32
    return %arg0, %arg1 : i32, i32
  }
}

</mosaic_0001>

<llo_original>
// kernel: tpu_custom_call.1
$region0: #{tpu_custom_call.1}
  #allocation0 [shape = 'u32[]', space=smem, size = 0x4, offset = 0x4, fixed_abs, tag = 'smem constant byte address 0x4 - core index']
  #allocation1 [shape = 'u32[144,128]{1,0:T(1,128)}', space=vmem, size = 0x12000, scoped, tag = 'internal scratch']
  %s0 = inlined_call_operand.hbm [shape: f32[8,128], index: 0, kind: input, shape index: {}]
  %s1 = inlined_call_operand.hbm [shape: f32[128,128], index: 1, kind: input, shape index: {}]
  %s2 = inlined_call_operand.vmem [shape: f32[1,128], index: 2, kind: input, shape index: {}]
  %s3 = inlined_call_operand.hbm [shape: f32[8,128], index: 3, kind: output, shape index: {}]
  %s4 = sld [smem:[#allocation0]]
  $region30: #{tpu_custom_call.1} parent=0
    _
  %s6 = ssub.s32 1, %s4
  %s7 = scalar_select 0, %s6, %s4
  $region1: #{tpu_custom_call.1} parent=0
    #allocation2 [shape = 'u8[4096]{0}', space=vmem, size = 0x1000, scoped, tag = 'input window, operand 0, single buffered']
    #allocation3 [shape = 's32[1]{0}', space=sflag, size = 0x4, scoped, tag = 'scoped memory for tpu_custom_call.1']
    #allocation4 [shape = 's32[1]{0}', space=sflag, size = 0x4, scoped, tag = 'scoped memory for tpu_custom_call.1']
    #allocation5 [shape = 'u8[65536]{0}', space=vmem, size = 0x10000, scoped, tag = 'input window, operand 1, single buffered']
    #allocation6 [shape = 's32[1]{0}', space=sflag, size = 0x4, scoped, tag = 'scoped memory for tpu_custom_call.1']
    #allocation7 [shape = 'u8[4096]{0}', space=vmem, size = 0x1000, scoped, tag = 'output window, operand 0, single buffered']
    %8 = vsyncpa [#allocation3], 0
    %9 = vsyncpa [#allocation6], 0
    %10 = vsyncpa [#allocation4], 0
    // Predicated region
    $region2: #{tpu_custom_call.1} parent=1 // pred_check
      _
    $region3: #{tpu_custom_call.1} parent=1 // pred_check_branch
      %12 = sbr.rel (0) target = $region5
    $region4: #{tpu_custom_call.1} parent=1 // pred_region
      %s14 = ssub.s32 128, 128
      %15 = vsyncadd [#allocation3], %s14
      %s17 = sshll.u32 [#allocation2], 4
      %s18 = int_to_ptr.vmem [resolvable:$true] %s17
      %20 = dma.hbm_to_vmem [thread:$0]  %s0, 128, %s18, [#allocation3]
    $region5: #{tpu_custom_call.1} parent=1 // pred_fallthru
      _
    // Predicated region
    $region6: #{tpu_custom_call.1} parent=1 // pred_check
      _
    $region7: #{tpu_custom_call.1} parent=1 // pred_check_branch
      %22 = sbr.rel (0) target = $region9
    $region8: #{tpu_custom_call.1} parent=1 // pred_region
      %s24 = ssub.s32 2048, 2048
      %25 = vsyncadd [#allocation6], %s24
      %s26 = sshll.u32 [#allocation5], 4
      %s27 = int_to_ptr.vmem [resolvable:$true] %s26
      %32 = dma.hbm_to_vmem [thread:$0]  %s1, 2048, %s27, [#allocation6], 128, 128, 8
    $region9: #{tpu_custom_call.1} parent=1 // pred_fallthru
      _
    // Predicated region
    $region10: #{tpu_custom_call.1} parent=1 // pred_check
      _
    $region11: #{tpu_custom_call.1} parent=1 // pred_check_branch
      %34 = sbr.rel (0) target = $region13
    $region12: #{tpu_custom_call.1} parent=1 // pred_region
      _
    $region13: #{tpu_custom_call.1} parent=1 // pred_fallthru
      _
    // Predicated region
    $region14: #{tpu_custom_call.1} parent=1 // pred_check
      _
    $region15: #{tpu_custom_call.1} parent=1 // pred_check_branch
      %36 = sbr.rel (0) target = $region17
    $region16: #{tpu_custom_call.1} parent=1 // pred_region
      %37 = dma.done [#allocation3], 128
    $region17: #{tpu_custom_call.1} parent=1 // pred_fallthru
      _
    // Predicated region
    $region18: #{tpu_custom_call.1} parent=1 // pred_check
      _
    $region19: #{tpu_custom_call.1} parent=1 // pred_check_branch
      %39 = sbr.rel (0) target = $region21
    $region20: #{tpu_custom_call.1} parent=1 // pred_region
      %40 = dma.done [#allocation6], 2048
    $region21: #{tpu_custom_call.1} parent=1 // pred_fallthru
      _
    %v41 = vld [vmem:[#allocation2] sm:$0xff]
    %v42 = vld [vmem:[#allocation5] sm:$0xff]
    %v43 = vld [vmem:[#allocation5 + $0x8] sm:$0xff]
    %v44 = vld [vmem:[#allocation5 + $0x10] sm:$0xff]
    %v45 = vld [vmem:[#allocation5 + $0x18] sm:$0xff]
    %v46 = vld [vmem:[#allocation5 + $0x20] sm:$0xff]
    %v47 = vld [vmem:[#allocation5 + $0x28] sm:$0xff]
    %v48 = vld [vmem:[#allocation5 + $0x30] sm:$0xff]
    %v49 = vld [vmem:[#allocation5 + $0x38] sm:$0xff]
    %v50 = vld [vmem:[#allocation5 + $0x40] sm:$0xff]
    %v51 = vld [vmem:[#allocation5 + $0x48] sm:$0xff]
    %v52 = vld [vmem:[#allocation5 + $0x50] sm:$0xff]
    %v53 = vld [vmem:[#allocation5 + $0x58] sm:$0xff]
    %v54 = vld [vmem:[#allocation5 + $0x60] sm:$0xff]
    %v55 = vld [vmem:[#allocation5 + $0x68] sm:$0xff]
    %v56 = vld [vmem:[#allocation5 + $0x70] sm:$0xff]
    %v57 = vld [vmem:[#allocation5 + $0x78] sm:$0xff]
    %v58 = vld [vmem:[%s2] sm:$0x1]
    %v60 = vlaneseq
    %v61 = vshrl.u32 %v60, 7
    %v62 = vsub.s32 0, %v61
    %v63 = vrot.slane %v58, %v62
    %65 = vmatprep.subr.mxu0 0.0
    %66 = vmatpush1.msra.mxu0 %v42
    %67 = vmatprep.subr.mxu0 0.0
    %68 = vmatpush1.msra.mxu0 %v43
    %69 = vmatprep.subr.mxu0 0.0
    %70 = vmatpush1.msra.mxu0 %v44
    %71 = vmatprep.subr.mxu0 0.0
    %72 = vmatpush1.msra.mxu0 %v45
    %73 = vmatprep.subr.mxu0 0.0
    %74 = vmatpush1.msra.mxu0 %v46
    %75 = vmatprep.subr.mxu0 0.0
    %76 = vmatpush1.msra.mxu0 %v47
    %77 = vmatprep.subr.mxu0 0.0
    %78 = vmatpush1.msra.mxu0 %v48
    %79 = vmatprep.subr.mxu0 0.0
    %80 = vmatpush1.msra.mxu0 %v49
    %81 = vmatprep.subr.mxu0 0.0
    %82 = vmatpush1.msra.mxu0 %v50
    %83 = vmatprep.subr.mxu0 0.0
    %84 = vmatpush1.msra.mxu0 %v51
    %85 = vmatprep.subr.mxu0 0.0
    %86 = vmatpush1.msra.mxu0 %v52
    %87 = vmatprep.subr.mxu0 0.0
    %88 = vmatpush1.msra.mxu0 %v53
    %89 = vmatprep.subr.mxu0 0.0
    %90 = vmatpush1.msra.mxu0 %v54
    %91 = vmatprep.subr.mxu0 0.0
    %92 = vmatpush1.msra.mxu0 %v55
    %93 = vmatprep.subr.mxu0 0.0
    %94 = vmatpush1.msra.mxu0 %v56
    %95 = vmatprep.subr.mxu0 0.0
    %96 = vmatpush1.msra.mxu0 %v57
    %97 = vmatprep.subr.mxu0 0.0
    %98 = vmatpush1.msra.mxu0 0.0
    %99 = vmatprep.subr.mxu0 0.0
    %100 = vmatpush1.msra.mxu0 0.0
    %101 = vmatprep.subr.mxu0 0.0
    %102 = vmatpush1.msra.mxu0 0.0
    %103 = vmatprep.subr.mxu0 0.0
    %104 = vmatpush1.msra.mxu0 0.0
    %105 = vmatprep.subr.mxu0 0.0
    %106 = vmatpush1.msra.mxu0 0.0
    %107 = vmatprep.subr.mxu0 0.0
    %108 = vmatpush1.msra.mxu0 0.0
    %109 = vmatprep.subr.mxu0 0.0
    %110 = vmatpush1.msra.mxu0 0.0
    %111 = vmatprep.subr.mxu0 0.0
    %112 = vmatpush1.msra.mxu0 0.0
    %113 = vmatprep.subr.mxu0 0.0
    %114 = vmatpush1.msra.mxu0 0.0
    %115 = vmatprep.subr.mxu0 0.0
    %116 = vmatpush1.msra.mxu0 0.0
    %117 = vmatprep.subr.mxu0 0.0
    %118 = vmatpush1.msra.mxu0 0.0
    %119 = vmatprep.subr.mxu0 0.0
    %120 = vmatpush1.msra.mxu0 0.0
    %121 = vmatprep.subr.mxu0 0.0
    %122 = vmatpush1.msra.mxu0 0.0
    %123 = vmatprep.subr.mxu0 0.0
    %124 = vmatpush1.msra.mxu0 0.0
    %125 = vmatprep.subr.mxu0 0.0
    %126 = vmatpush1.msra.mxu0 0.0
    %127 = vmatprep.subr.mxu0 0.0
    %128 = vmatpush1.msra.mxu0 0.0
    %129 = vmatprep.mubr.f32.mxu0 0.0
    %130 = vmatmul.mubr.f32.gmra.mrb[0].mxu0 %v41
    %v131 = vpop.f32.mrb[0].mxu0
    %v132 = vadd.f32 %v63, %v131
    %v133 = vpop.f32.mrb[0].mxu0
    %134 = vdwg.mxu0
    %135 = vst [vmem:[#allocation7] sm:$0xff] %v132
    // Predicated region
    $region22: #{tpu_custom_call.1} parent=1 // pred_check
      _
    $region23: #{tpu_custom_call.1} parent=1 // pred_check_branch
      %137 = sbr.rel (0) target = $region25
    $region24: #{tpu_custom_call.1} parent=1 // pred_region
      %s139 = ssub.s32 128, 128
      %140 = vsyncadd [#allocation4], %s139
      %s142 = sshll.u32 [#allocation7], 4
      %s143 = int_to_ptr.vmem [resolvable:$true] %s142
      %145 = dma.vmem_to_hbm [thread:$0]  %s143, 128, %s3, [#allocation4]
    $region25: #{tpu_custom_call.1} parent=1 // pred_fallthru
      _
    // Predicated region
    $region26: #{tpu_custom_call.1} parent=1 // pred_check
      _
    $region27: #{tpu_custom_call.1} parent=1 // pred_check_branch
      %147 = sbr.rel (0) target = $region29
    $region28: #{tpu_custom_call.1} parent=1 // pred_region
      %148 = dma.done [#allocation4], 128
    $region29: #{tpu_custom_call.1} parent=1 // pred_fallthru
      _
    %149 = vsyncpa [#allocation3], 1
    %150 = vsyncpa [#allocation6], 1
    %151 = vsyncpa [#allocation4], 1

</llo_original>
